<compile_context>
chip_gen: v5e
topology: v5e:2x2
jax: 0.10.0
libtpu: 0.0.40
codegen_flags: <defaults>
</compile_context>

<pallas_src>
import numpy as np
import jax
import jax.numpy as jnp
from jax import lax
from jax.experimental import pallas as pl
from jax.experimental.pallas import tpu as pltpu

KH = KW = 3          # 3x3 kernel
_LANES = 128
_SUBLANES = 8


def _round_up(x, m):
    return (x + m - 1) // m * m


def build_conv3x3_relu_params(w_oihw, bias, *, H, W):
    """One-time, host-side (numpy) repack of (OC, C, 3, 3) weights into a
    width-Toeplitz slab + lane-tiled bias.  Never hits the per-call path.

      rhs[ky*CWpad + c*W + (wo + kx), wo*OC + oc] = w[oc, c, ky, kx]
      b_tiled[0, wo*OC + oc]                      = bias[oc]

    with CWpad / Npad lane-padded to multiples of 128 (zero rows / columns).
    """
    w_np = np.asarray(w_oihw, dtype=np.float32)
    b_np = np.asarray(bias, dtype=np.float32)
    OC, C, _, _ = w_np.shape
    Wo = W - (KW - 1)
    CW = C * W
    CWpad = _round_up(CW, _LANES)        # lane-align every ky group of K
    Npad = _round_up(Wo * OC, _LANES)    # lane-dense, full-tile output columns

    rhs = np.zeros((KH * CWpad, Npad), dtype=np.float32)
    for ky in range(KH):
        for c in range(C):
            for kx in range(KW):
                for wo in range(Wo):
                    row = ky * CWpad + c * W + wo + kx
                    # '+=' (not '='): (row, col-group) pairs are unique for
                    # stride=1/padding=0, but accumulate stays correct if the
                    # mapping ever changes.
                    rhs[row, wo * OC:(wo + 1) * OC] += w_np[:, c, ky, kx]

    b_tiled = np.zeros((1, Npad), dtype=np.float32)
    b_tiled[0, :Wo * OC] = np.tile(b_np, Wo)
    return jnp.asarray(rhs), jnp.asarray(b_tiled)


def _conv3x3_relu_kernel(x_ref, w_ref, b_ref, o_ref):
    # x_ref: (N, Hpad, CWpad)   input rows as (h, c*W + w), lane-padded to 128
    # w_ref: (KH*CWpad, Npad)   width-Toeplitz weight slab
    # b_ref: (1, Npad)          bias tiled to the (wo, oc) lane layout
    # o_ref: (N*Ho_pad, Npad)   full-(8,128)-tile output slab
    N, Hpad, CWpad = x_ref.shape
    Ho_pad = Hpad - (KH - 1)

    # LHS assembly: 3 lane-aligned (128-lane) sublane-offset slices + one lane
    # concat; the leading-dim merge is a free reshape (Ho_pad % 8 == 0).
    pieces = [x_ref[:, ky:ky + Ho_pad, :] for ky in range(KH)]   # (N, Ho_pad, CWpad)
    lhs = jnp.concatenate(pieces, axis=2).reshape(N * Ho_pad, KH * CWpad)

    # Single fused MXU contraction: all 9 taps x C channels accumulate in-MXU.
    acc = jnp.dot(lhs, w_ref[...], preferred_element_type=jnp.float32)
    acc = jnp.maximum(acc + b_ref[...], 0.0)                      # bias + ReLU
    o_ref[...] = acc.astype(o_ref.dtype)


def conv3x3_relu(x_nchw, rhs, b_tiled, *, oc):
    """relu(conv2d(x, w, stride=1, padding=0) + b), NCHW in / NCHW out.

    `rhs` / `b_tiled` come from build_conv3x3_relu_params (hoisted repack).
    """
    N, C, H, W = x_nchw.shape
    Ho, Wo = H - (KH - 1), W - (KW - 1)
    CW = C * W
    CWpad = rhs.shape[0] // KH
    Npad = rhs.shape[1]
    Ho_pad = _round_up(Ho, _SUBLANES)
    Hpad = Ho_pad + (KH - 1)

    # Per-call input prep (one small fused XLA op): NCHW -> (N, H, C*W),
    # lane-pad to 128 and H-pad so the output slab is full (8,128) tiles.
    xp = x_nchw.transpose(0, 2, 1, 3).reshape(N, H, CW)
    xp = jnp.pad(xp, ((0, 0), (0, Hpad - H), (0, CWpad - CW)))

    out_slab = pl.pallas_call(
        _conv3x3_relu_kernel,
        out_shape=jax.ShapeDtypeStruct((N * Ho_pad, Npad), x_nchw.dtype),
        grid=(1,),   # batch folded into the block: single step on v5e/v6e
        in_specs=[
            pl.BlockSpec((N, Hpad, CWpad), lambda i: (0, 0, 0)),
            pl.BlockSpec((KH * CWpad, Npad), lambda i: (0, 0)),
            pl.BlockSpec((1, Npad), lambda i: (0, 0)),
        ],
        out_specs=pl.BlockSpec((N * Ho_pad, Npad), lambda i: (0, 0)),
        compiler_params=pltpu.CompilerParams(
            dimension_semantics=("arbitrary",)),
    )(xp, rhs, b_tiled)
    # TODO(synk): on v7x, re-introduce a CORE_PARALLEL batch grid axis (or
    # pl.core_map over a tensorcore mesh) so both TCs get an image each.

    out = out_slab.reshape(N, Ho_pad, Npad)[:, :Ho, :Wo * oc]
    # (N, Ho, Wo*OC) row-major == (N, Ho, Wo, OC); one small transpose back to
    # NCHW only to honor the PyTorch module contract (NHWC consumers can take
    # the lane-dense slab directly).
    return out.reshape(N, Ho, Wo, oc).transpose(0, 3, 1, 2)


if __name__ == "__main__":
    # Small shapes implied by the module: batch=2, ic=4, oc=8, spatial=16.
    N, IC, OC, H, W = 2, 4, 8, 16, 16

    key = jax.random.PRNGKey(0)
    k_x, k_w, k_b = jax.random.split(key, 3)

    x = jax.random.normal(k_x, (N, IC, H, W), dtype=jnp.float32)

    # Deterministic param init (PyTorch-style uniform bound = 1/sqrt(fan_in)).
    fan_in = IC * 3 * 3
    bound = 1.0 / (fan_in ** 0.5)
    w = jax.random.uniform(k_w, (OC, IC, 3, 3), minval=-bound, maxval=bound,
                           dtype=jnp.float32)
    b = jax.random.uniform(k_b, (OC,), minval=-bound, maxval=bound,
                           dtype=jnp.float32)

    # Param-prep hoisted out of the per-call path: done once, host-side.
    rhs, b_tiled = build_conv3x3_relu_params(w, b, H=H, W=W)

    @jax.jit
    def conv_fn(x_in, rhs_in, b_in):
        return conv3x3_relu(x_in, rhs_in, b_in, oc=OC)

    out = conv_fn(x, rhs, b_tiled)
    out = jax.block_until_ready(out)

    # Sanity check against XLA's native conv (not part of the kernel).
    ref = lax.conv_general_dilated(
        x, w, window_strides=(1, 1), padding="VALID",
        dimension_numbers=("NCHW", "OIHW", "NCHW"),
    ) + b.reshape(1, OC, 1, 1)
    ref = jnp.maximum(ref, 0.0)

    assert out.shape == (N, OC, H - 2, W - 2)
    assert jnp.allclose(out, ref, atol=1e-4, rtol=1e-4), \
        float(jnp.max(jnp.abs(out - ref)))

    print("KERNEL_OK")
</pallas_src>

<mosaic_0001>
module attributes {stable_mosaic.version = 11 : i64} {
  func.func @_conv3x3_relu_kernel(%arg0: i32, %arg1: memref<2x18x128xf32, #tpu.memory_space<vmem>>, %arg2: memref<384x128xf32, #tpu.memory_space<vmem>>, %arg3: memref<1x128xf32, #tpu.memory_space<vmem>>, %arg4: memref<32x128xf32, #tpu.memory_space<vmem>>) attributes {dimension_semantics = [#tpu.dimension_semantics<arbitrary>], iteration_bounds = array<i64: 1>, scalar_prefetch = 0 : i64, scratch_operands = 0 : i64, tpu.core_type = #tpu.core_type<tc>, window_params = [{pipeline_mode = #tpu.pipeline_mode<synchronous>, transform_indices = @transform_0, window_bounds = array<i64: 2, 18, 128>}, {pipeline_mode = #tpu.pipeline_mode<synchronous>, transform_indices = @transform_1, window_bounds = array<i64: 384, 128>}, {pipeline_mode = #tpu.pipeline_mode<synchronous>, transform_indices = @transform_2, window_bounds = array<i64: 1, 128>}, {pipeline_mode = #tpu.pipeline_mode<synchronous>, transform_indices = @transform_3, window_bounds = array<i64: 32, 128>}]} {
    %c0 = arith.constant 0 : index
    %c0_0 = arith.constant 0 : index
    %c0_1 = arith.constant 0 : index
    %0 = vector.load %arg1[%c0, %c0_0, %c0_1] : memref<2x18x128xf32, #tpu.memory_space<vmem>>, vector<2x16x128xf32>
    %c0_2 = arith.constant 0 : index
    %c1 = arith.constant 1 : index
    %c0_3 = arith.constant 0 : index
    %1 = vector.load %arg1[%c0_2, %c1, %c0_3] : memref<2x18x128xf32, #tpu.memory_space<vmem>>, vector<2x16x128xf32>
    %c0_4 = arith.constant 0 : index
    %c2 = arith.constant 2 : index
    %c0_5 = arith.constant 0 : index
    %2 = vector.load %arg1[%c0_4, %c2, %c0_5] : memref<2x18x128xf32, #tpu.memory_space<vmem>>, vector<2x16x128xf32>
    %3 = tpu.concatenate %0, %1, %2 in 2 : vector<2x16x128xf32>, vector<2x16x128xf32>, vector<2x16x128xf32> -> vector<2x16x384xf32>
    %4 = vector.shape_cast %3 : vector<2x16x384xf32> to vector<32x384xf32>
    %c0_6 = arith.constant 0 : index
    %c0_7 = arith.constant 0 : index
    %5 = vector.load %arg2[%c0_6, %c0_7] : memref<384x128xf32, #tpu.memory_space<vmem>>, vector<384x128xf32>
    %cst = arith.constant dense<0.000000e+00> : vector<32x128xf32>
    %6 = tpu.matmul %4, %5, %cst {dimension_numbers = #tpu.dot_dimension_numbers<[1], [0], [0], [1], [0, 0, 1, 1], [], []>} : vector<32x384xf32>, vector<384x128xf32>, vector<32x128xf32> -> vector<32x128xf32>
    %c0_8 = arith.constant 0 : index
    %c0_9 = arith.constant 0 : index
    %7 = vector.load %arg3[%c0_8, %c0_9] : memref<1x128xf32, #tpu.memory_space<vmem>>, vector<1x128xf32>
    %8 = vector.broadcast %7 : vector<1x128xf32> to vector<32x128xf32>
    %9 = arith.addf %6, %8 : vector<32x128xf32>
    %cst_10 = arith.constant 0.000000e+00 : f32
    %10 = vector.broadcast %cst_10 : f32 to vector<32x128xf32>
    %11 = arith.maximumf %9, %10 : vector<32x128xf32>
    %c0_11 = arith.constant 0 : index
    %c0_12 = arith.constant 0 : index
    %12 = vector.load %arg4[%c0_11, %c0_12] : memref<32x128xf32, #tpu.memory_space<vmem>>, vector<32x128xf32>
    tpu.vector_store %arg4[%c0_11, %c0_12], %11 {strides = array<i32>} : memref<32x128xf32, #tpu.memory_space<vmem>>, vector<32x128xf32>,
    return
  }
  func.func @transform_0(%arg0: i32) -> (i32, i32, i32) {
    %c0_i32 = arith.constant 0 : i32
    %c0_i32_0 = arith.constant 0 : i32
    %c0_i32_1 = arith.constant 0 : i32
    %c0_i32_2 = arith.constant 0 : i32
    return %c0_i32, %c0_i32_0, %c0_i32_1 : i32, i32, i32
  }
  func.func @transform_1(%arg0: i32) -> (i32, i32) {
    %c0_i32 = arith.constant 0 : i32
    %c0_i32_0 = arith.constant 0 : i32
    %c0_i32_1 = arith.constant 0 : i32
    return %c0_i32, %c0_i32_0 : i32, i32
  }
  func.func @transform_2(%arg0: i32) -> (i32, i32) {
    %c0_i32 = arith.constant 0 : i32
    %c0_i32_0 = arith.constant 0 : i32
    %c0_i32_1 = arith.constant 0 : i32
    return %c0_i32, %c0_i32_0 : i32, i32
  }
  func.func @transform_3(%arg0: i32) -> (i32, i32) {
    %c0_i32 = arith.constant 0 : i32
    %c0_i32_0 = arith.constant 0 : i32
    %c0_i32_1 = arith.constant 0 : i32
    return %c0_i32, %c0_i32_0 : i32, i32
  }
}

</mosaic_0001>

<llo_original>
// kernel: conv_fn.1
$region0: #{conv_fn.1}
  #allocation0 [shape = 'u32[]', space=smem, size = 0x4, offset = 0x4, fixed_abs, tag = 'smem constant byte address 0x4 - core index']
  #allocation1 [shape = 'u32[72,128]{1,0:T(1,128)}', space=vmem, size = 0x9000, scoped, tag = 'internal scratch']
  %s0 = inlined_call_operand.vmem [shape: f32[2,18,128], index: 0, kind: input, shape index: {}]
  %s1 = inlined_call_operand.vmem [shape: f32[384,128], index: 1, kind: input, shape index: {}]
  %s2 = inlined_call_operand.vmem [shape: f32[1,128], index: 2, kind: input, shape index: {}]
  %s3 = inlined_call_operand.vmem [shape: f32[32,128], index: 3, kind: output, shape index: {}]
  %s4 = sld [smem:[#allocation0]]
  $region22: #{conv_fn.1} parent=0
    _
  %s6 = ssub.s32 1, %s4
  %s7 = scalar_select 0, %s6, %s4
  // Predicated region
  $region2: #{conv_fn.1} parent=0 // pred_check
    _
  $region3: #{conv_fn.1} parent=0 // pred_check_branch
    %9 = sbr.rel (0) target = $region5
  $region4: #{conv_fn.1} parent=0 // pred_region
    _
  $region5: #{conv_fn.1} parent=0 // pred_fallthru
    _
  // Predicated region
  $region6: #{conv_fn.1} parent=0 // pred_check
    _
  $region7: #{conv_fn.1} parent=0 // pred_check_branch
    %11 = sbr.rel (0) target = $region9
  $region8: #{conv_fn.1} parent=0 // pred_region
    _
  $region9: #{conv_fn.1} parent=0 // pred_fallthru
    _
  // Predicated region
  $region10: #{conv_fn.1} parent=0 // pred_check
    _
  $region11: #{conv_fn.1} parent=0 // pred_check_branch
    %13 = sbr.rel (0) target = $region13
  $region12: #{conv_fn.1} parent=0 // pred_region
    _
  $region13: #{conv_fn.1} parent=0 // pred_fallthru
    _
  %v14 = vld [vmem:[%s0] sm:$0xff]
  %v15 = vld [vmem:[%s0 + $0x8] sm:$0xff]
  %v16 = vld [vmem:[%s0 + $0x18] sm:$0xff]
  %v17 = vld [vmem:[%s0 + $0x20] sm:$0xff]
  %v18 = vld [vmem:[%s0 + $0x1] sm:$0xff]
  %v19 = vld [vmem:[%s0 + $0x9] sm:$0xff]
  %v20 = vld [vmem:[%s0 + $0x19] sm:$0xff]
  %v21 = vld [vmem:[%s0 + $0x21] sm:$0xff]
  %v22 = vld [vmem:[%s0 + $0x2] sm:$0xff]
  %v23 = vld [vmem:[%s0 + $0xa] sm:$0xff]
  %v24 = vld [vmem:[%s0 + $0x1a] sm:$0xff]
  %v25 = vld [vmem:[%s0 + $0x22] sm:$0xff]
  %v26 = vld [vmem:[%s1] sm:$0xff]
  %v27 = vld [vmem:[%s1 + $0x8] sm:$0xff]
  %v28 = vld [vmem:[%s1 + $0x10] sm:$0xff]
  %v29 = vld [vmem:[%s1 + $0x18] sm:$0xff]
  %v30 = vld [vmem:[%s1 + $0x20] sm:$0xff]
  %v31 = vld [vmem:[%s1 + $0x28] sm:$0xff]
  %v32 = vld [vmem:[%s1 + $0x30] sm:$0xff]
  %v33 = vld [vmem:[%s1 + $0x38] sm:$0xff]
  %v34 = vld [vmem:[%s1 + $0x40] sm:$0xff]
  %v35 = vld [vmem:[%s1 + $0x48] sm:$0xff]
  %v36 = vld [vmem:[%s1 + $0x50] sm:$0xff]
  %v37 = vld [vmem:[%s1 + $0x58] sm:$0xff]
  %v38 = vld [vmem:[%s1 + $0x60] sm:$0xff]
  %v39 = vld [vmem:[%s1 + $0x68] sm:$0xff]
  %v40 = vld [vmem:[%s1 + $0x70] sm:$0xff]
  %v41 = vld [vmem:[%s1 + $0x78] sm:$0xff]
  %v42 = vld [vmem:[%s1 + $0x80] sm:$0xff]
  %v43 = vld [vmem:[%s1 + $0x88] sm:$0xff]
  %v44 = vld [vmem:[%s1 + $0x90] sm:$0xff]
  %v45 = vld [vmem:[%s1 + $0x98] sm:$0xff]
  %v46 = vld [vmem:[%s1 + $0xa0] sm:$0xff]
  %v47 = vld [vmem:[%s1 + $0xa8] sm:$0xff]
  %v48 = vld [vmem:[%s1 + $0xb0] sm:$0xff]
  %v49 = vld [vmem:[%s1 + $0xb8] sm:$0xff]
  %v50 = vld [vmem:[%s1 + $0xc0] sm:$0xff]
  %v51 = vld [vmem:[%s1 + $0xc8] sm:$0xff]
  %v52 = vld [vmem:[%s1 + $0xd0] sm:$0xff]
  %v53 = vld [vmem:[%s1 + $0xd8] sm:$0xff]
  %v54 = vld [vmem:[%s1 + $0xe0] sm:$0xff]
  %v55 = vld [vmem:[%s1 + $0xe8] sm:$0xff]
  %v56 = vld [vmem:[%s1 + $0xf0] sm:$0xff]
  %v57 = vld [vmem:[%s1 + $0xf8] sm:$0xff]
  %v58 = vld [vmem:[%s1 + $0x100] sm:$0xff]
  %v59 = vld [vmem:[%s1 + $0x108] sm:$0xff]
  %v60 = vld [vmem:[%s1 + $0x110] sm:$0xff]
  %v61 = vld [vmem:[%s1 + $0x118] sm:$0xff]
  %v62 = vld [vmem:[%s1 + $0x120] sm:$0xff]
  %v63 = vld [vmem:[%s1 + $0x128] sm:$0xff]
  %v64 = vld [vmem:[%s1 + $0x130] sm:$0xff]
  %v65 = vld [vmem:[%s1 + $0x138] sm:$0xff]
  %v66 = vld [vmem:[%s1 + $0x140] sm:$0xff]
  %v67 = vld [vmem:[%s1 + $0x148] sm:$0xff]
  %v68 = vld [vmem:[%s1 + $0x150] sm:$0xff]
  %v69 = vld [vmem:[%s1 + $0x158] sm:$0xff]
  %v70 = vld [vmem:[%s1 + $0x160] sm:$0xff]
  %v71 = vld [vmem:[%s1 + $0x168] sm:$0xff]
  %v72 = vld [vmem:[%s1 + $0x170] sm:$0xff]
  %v73 = vld [vmem:[%s1 + $0x178] sm:$0xff]
  %v74 = vld [vmem:[%s2] sm:$0x1]
  %v76 = vperm.slane %v74, 0
  %78 = vmatpush.msra.mxu0 %v41
  %79 = vmatpush.msra.mxu0 %v40
  %80 = vmatpush.msra.mxu0 %v39
  %81 = vmatpush.msra.mxu0 %v38
  %82 = vmatpush.msra.mxu0 %v37
  %83 = vmatpush.msra.mxu0 %v36
  %84 = vmatpush.msra.mxu0 %v35
  %85 = vmatpush.msra.mxu0 %v34
  %86 = vmatpush.msra.mxu0 %v33
  %87 = vmatpush.msra.mxu0 %v32
  %88 = vmatpush.msra.mxu0 %v31
  %89 = vmatpush.msra.mxu0 %v30
  %90 = vmatpush.msra.mxu0 %v29
  %91 = vmatpush.msra.mxu0 %v28
  %92 = vmatpush.msra.mxu0 %v27
  %93 = vmatpush.msra.mxu0 %v26
  %94 = vmatmul.f32.gmra.mxu0 %v14
  %v95 = vpop.f32.mrf.mxu0
  %v96 = vadd.f32 %v76, %v95
  %97 = vmatmul.f32.gmra.mxu0 %v15
  %v98 = vpop.f32.mrf.mxu0
  %v99 = vadd.f32 %v76, %v98
  %100 = vmatmul.f32.gmra.mxu0 %v16
  %v101 = vpop.f32.mrf.mxu0
  %v102 = vadd.f32 %v76, %v101
  %103 = vmatmul.f32.gmra.mxu0 %v17
  %v104 = vpop.f32.mrf.mxu0
  %v105 = vadd.f32 %v76, %v104
  %106 = vdwg.mxu0
  %107 = vmatpush.msra.mxu0 %v57
  %108 = vmatpush.msra.mxu0 %v56
  %109 = vmatpush.msra.mxu0 %v55
  %110 = vmatpush.msra.mxu0 %v54
  %111 = vmatpush.msra.mxu0 %v53
  %112 = vmatpush.msra.mxu0 %v52
  %113 = vmatpush.msra.mxu0 %v51
  %114 = vmatpush.msra.mxu0 %v50
  %115 = vmatpush.msra.mxu0 %v49
  %116 = vmatpush.msra.mxu0 %v48
  %117 = vmatpush.msra.mxu0 %v47
  %118 = vmatpush.msra.mxu0 %v46
  %119 = vmatpush.msra.mxu0 %v45
  %120 = vmatpush.msra.mxu0 %v44
  %121 = vmatpush.msra.mxu0 %v43
  %122 = vmatpush.msra.mxu0 %v42
  %123 = vmatmul.f32.gmra.mxu0 %v18
  %v124 = vpop.f32.mrf.mxu0
  %v125 = vadd.f32 %v96, %v124
  %126 = vmatmul.f32.gmra.mxu0 %v19
  %v127 = vpop.f32.mrf.mxu0
  %v128 = vadd.f32 %v99, %v127
  %129 = vmatmul.f32.gmra.mxu0 %v20
  %v130 = vpop.f32.mrf.mxu0
  %v131 = vadd.f32 %v102, %v130
  %132 = vmatmul.f32.gmra.mxu0 %v21
  %v133 = vpop.f32.mrf.mxu0
  %v134 = vadd.f32 %v105, %v133
  %135 = vdwg.mxu0
  %136 = vmatpush.msra.mxu0 %v73
  %137 = vmatpush.msra.mxu0 %v72
  %138 = vmatpush.msra.mxu0 %v71
  %139 = vmatpush.msra.mxu0 %v70
  %140 = vmatpush.msra.mxu0 %v69
  %141 = vmatpush.msra.mxu0 %v68
  %142 = vmatpush.msra.mxu0 %v67
  %143 = vmatpush.msra.mxu0 %v66
  %144 = vmatpush.msra.mxu0 %v65
  %145 = vmatpush.msra.mxu0 %v64
  %146 = vmatpush.msra.mxu0 %v63
  %147 = vmatpush.msra.mxu0 %v62
  %148 = vmatpush.msra.mxu0 %v61
  %149 = vmatpush.msra.mxu0 %v60
  %150 = vmatpush.msra.mxu0 %v59
  %151 = vmatpush.msra.mxu0 %v58
  %152 = vmatmul.f32.gmra.mxu0 %v22
  %v153 = vpop.f32.mrf.mxu0
  %v154 = vadd.f32 %v125, %v153
  %155 = vmatmul.f32.gmra.mxu0 %v23
  %v156 = vpop.f32.mrf.mxu0
  %v157 = vadd.f32 %v128, %v156
  %158 = vmatmul.f32.gmra.mxu0 %v24
  %v159 = vpop.f32.mrf.mxu0
  %v160 = vadd.f32 %v131, %v159
  %161 = vmatmul.f32.gmra.mxu0 %v25
  %v162 = vpop.f32.mrf.mxu0
  %v163 = vadd.f32 %v134, %v162
  %164 = vdwg.mxu0
  %v165 = vmax.f32 %v154, 0.0
  %v166 = vmax.f32 %v157, 0.0
  %v167 = vmax.f32 %v160, 0.0
  %v168 = vmax.f32 %v163, 0.0
  %169 = vst [vmem:[%s3] sm:$0xff] %v165
  %170 = vst [vmem:[%s3 + $0x8] sm:$0xff] %v166
  %171 = vst [vmem:[%s3 + $0x10] sm:$0xff] %v167
  %172 = vst [vmem:[%s3 + $0x18] sm:$0xff] %v168
  // Predicated region
  $region14: #{conv_fn.1} parent=0 // pred_check
    _
  $region15: #{conv_fn.1} parent=0 // pred_check_branch
    %174 = sbr.rel (0) target = $region17
  $region16: #{conv_fn.1} parent=0 // pred_region
    _
  $region17: #{conv_fn.1} parent=0 // pred_fallthru
    _
  // Predicated region
  $region18: #{conv_fn.1} parent=0 // pred_check
    _
  $region19: #{conv_fn.1} parent=0 // pred_check_branch
    %176 = sbr.rel (0) target = $region21
  $region20: #{conv_fn.1} parent=0 // pred_region
    _
  $region21: #{conv_fn.1} parent=0 // pred_fallthru
    _

</llo_original>
